<compile_context>
chip_gen: v5e
topology: v5e:2x2
jax: 0.10.0
libtpu: 0.0.40
codegen_flags: <defaults>
</compile_context>

<pallas_src>
import jax
import jax.numpy as jnp
from jax.experimental import pallas as pl
from jax.experimental.pallas import tpu as pltpu

NFEAT = 40          # fixed by the hard-coded 40-column slicing in the PyTorch forward
NCHAN = 5           # five feature channels -> 5 * nfeat = 200 input columns
LANE = 128


def _round_up(a, b):
    return (a + b - 1) // b * b


def _vmem_limit(est_bytes):
    # Explicit scoped-VMEM limit: cover the estimated footprint with headroom while
    # staying comfortably under v7x's 64 MiB physical VMEM (v5e/v6e have 128 MiB,
    # but their *default scoped* limits are only 16/32 MiB).
    return int(min(max(est_bytes + (8 << 20), 32 << 20), 56 << 20))


def _maybe_buffered(block_shape, index_map, depth):
    """BlockSpec with deeper pipelining when supported; silently falls back."""
    if depth <= 2:
        return pl.BlockSpec(block_shape, index_map)
    try:
        return pl.BlockSpec(block_shape, index_map, pipeline_mode=pl.Buffered(depth))
    except Exception:  # pipeline_mode / Buffered unavailable in this jax version
        return pl.BlockSpec(block_shape, index_map)


# ----------------------------------------------------------------------------
# Block-size heuristics (re-derived per the review; safe on v5e/v6e/v7x).
# ----------------------------------------------------------------------------
def _pick_phase2_blocks(n):
    n128 = _round_up(n, 128)
    # Output-row tile: 128 for small/moderate N (low pad waste, >=2 parallel steps
    # for v7x's two TensorCores as soon as N >= 256), 256 once N is large.
    block_i = 256 if n >= 2048 else 128
    block_i = min(block_i, n128)
    # Contraction tile: as wide as possible (longer contiguous adj DMA runs, fewer
    # grid steps on the memory-bound phase) without over-padding small problems.
    block_j = 128
    for cand in (256, 512, 1024):
        if _round_up(n, cand) - n <= max(127, n // 8):
            block_j = cand
    block_j = min(block_j, max(128, n128))
    return block_i, block_j


def _pick_phase1_block(n_pad_rows):
    blk = 128
    for cand in (256, 512, 1024, 2048):
        if n_pad_rows % cand == 0:
            blk = cand
    return blk


# ----------------------------------------------------------------------------
# Phase 1: s = relu(x @ W1_blockdiag + b1) @ W2_pad, tiled over node-row blocks.
# ----------------------------------------------------------------------------
def _phase1_support(x_p, w1_bd, b1_t, w2_p, n_real, block_rows):
    n_pad, in_dim = x_p.shape
    h5 = w1_bd.shape[1]
    nc_pad = w2_p.shape[1]
    needs_mask = (n_pad != n_real)   # static: padding only ever lands at the end

    def kernel(x_ref, w1_ref, b1_ref, w2_ref, s_ref):
        h = jnp.maximum(
            jnp.dot(x_ref[...], w1_ref[...], preferred_element_type=jnp.float32)
            + b1_ref[...],
            0.0,
        )
        s = jnp.dot(h, w2_ref[...], preferred_element_type=jnp.float32)
        if not needs_mask:
            s_ref[...] = s
        else:
            i = pl.program_id(0)
            last = pl.num_programs(0) - 1

            @pl.when(i != last)
            def _():
                s_ref[...] = s

            @pl.when(i == last)
            def _():
                # Zero padded rows (padded x rows give relu(b1) @ W2 != 0) so the
                # conv-bias bleed into padded adj columns in phase 2 contributes
                # exactly nothing. Only the last tile can contain padding.
                row = jax.lax.broadcasted_iota(jnp.int32, s.shape, 0) + i * block_rows
                s_ref[...] = jnp.where(row < n_real, s, 0.0)

    est = (2 * block_rows * in_dim * 4 + 2 * in_dim * h5 * 4 + 2 * h5 * 4
           + 2 * h5 * nc_pad * 4 + 2 * block_rows * nc_pad * 4)
    return pl.pallas_call(
        kernel,
        out_shape=jax.ShapeDtypeStruct((n_pad, nc_pad), jnp.float32),
        grid_spec=pltpu.PrefetchScalarGridSpec(
            num_scalar_prefetch=0,
            grid=(n_pad // block_rows,),
            in_specs=[
                pl.BlockSpec((block_rows, in_dim), lambda i: (i, 0)),   # x row tile
                pl.BlockSpec((in_dim, h5), lambda i: (0, 0)),           # W1 block-diag
                pl.BlockSpec((1, h5), lambda i: (0, 0)),                # b1 tiled
                pl.BlockSpec((h5, nc_pad), lambda i: (0, 0)),           # W2 (padded)
            ],
            out_specs=pl.BlockSpec((block_rows, nc_pad), lambda i: (i, 0)),
        ),
        compiler_params=pltpu.CompilerParams(
            dimension_semantics=("parallel",),
            vmem_limit_bytes=_vmem_limit(est)),
    )(x_p, w1_bd, b1_t, w2_p)


# ----------------------------------------------------------------------------
# Phase 2: out = (1x1-conv combined adj) @ s + b2.
#   grid = (row tiles "parallel", contraction tiles "arbitrary"), f32 VMEM accumulator.
# ----------------------------------------------------------------------------
def _phase2_aggregate(adj4_p, s, conv_w, conv_b, b2_p, block_i, block_j):
    _, n_rows, n_cols = adj4_p.shape
    nc_pad = s.shape[1]
    grid_i = n_rows // block_i
    grid_j = n_cols // block_j

    # Keep the whole support matrix s resident in VMEM when it is cheap (only
    # n_cols * 512 B at nc_pad=128); otherwise fall back to streaming row blocks.
    s_resident = (2 * n_cols * nc_pad * 4) <= (16 << 20)

    smem_spec = pl.BlockSpec(memory_space=pltpu.MemorySpace.SMEM)
    # Deeper buffering on the adj stream only pays when the contraction loop is long.
    adj_depth = 3 if grid_j >= 4 else 2
    adj_spec = _maybe_buffered((4, block_i, block_j), lambda i, j: (0, i, j), adj_depth)
    if s_resident:
        s_spec = pl.BlockSpec((n_cols, nc_pad), lambda i, j: (0, 0))     # fetched once
    else:
        s_spec = pl.BlockSpec((block_j, nc_pad), lambda i, j: (j, 0))

    def kernel(convw_ref, convb_ref, adj_ref, s_ref, b2_ref, out_ref, acc_ref):
        j = pl.program_id(1)

        @pl.when(j == 0)
        def _():
            acc_ref[...] = jnp.zeros_like(acc_ref)

        # 1x1 Conv2d(4->1) combine on this adj tile. adj streams as bf16 and is
        # upcast in-register by the f32 scalar multiplies (pairwise to bound live
        # ranges); the combine result is f32.
        a01 = convw_ref[0] * adj_ref[0] + convw_ref[1] * adj_ref[1]
        a23 = convw_ref[2] * adj_ref[2] + convw_ref[3] * adj_ref[3]
        adj_t = (a01 + a23) + convb_ref[0]

        if s_resident:
            off = pl.multiple_of(j * block_j, block_j)
            s_blk = s_ref[pl.ds(off, block_j), :]
        else:
            s_blk = s_ref[...]

        acc_ref[...] += jnp.dot(adj_t, s_blk, preferred_element_type=jnp.float32)

        @pl.when(j == pl.num_programs(1) - 1)
        def _():
            out_ref[...] = acc_ref[...] + b2_ref[...]

    est = (adj_depth * 4 * block_i * block_j * 2                              # bf16 adj bufs
           + (2 * n_cols * nc_pad * 4 if s_resident else 2 * block_j * nc_pad * 4)
           + 2 * block_i * nc_pad * 4                                         # out bufs
           + block_i * nc_pad * 4                                             # accumulator
           + 2 * nc_pad * 4)                                                  # b2
    return pl.pallas_call(
        kernel,
        out_shape=jax.ShapeDtypeStruct((n_rows, nc_pad), jnp.float32),
        grid_spec=pltpu.PrefetchScalarGridSpec(
            num_scalar_prefetch=0,
            grid=(grid_i, grid_j),
            in_specs=[
                smem_spec,                                       # conv weights (4,)
                smem_spec,                                       # conv bias (1,)
                adj_spec,                                        # bf16 adj tile
                s_spec,                                          # support (resident/stream)
                pl.BlockSpec((1, nc_pad), lambda i, j: (0, 0)),  # b2 (padded)
            ],
            out_specs=pl.BlockSpec((block_i, nc_pad), lambda i, j: (i, 0)),
            scratch_shapes=[pltpu.VMEM((block_i, nc_pad), jnp.float32)],
        ),
        compiler_params=pltpu.CompilerParams(
            dimension_semantics=("parallel", "arbitrary"),
            vmem_limit_bytes=_vmem_limit(est)),
    )(conv_w, conv_b, adj4_p, s, b2_p)


# ----------------------------------------------------------------------------
# Wrapper / layout plumbing
# ----------------------------------------------------------------------------
def _derived_layouts(params, nc_pad):
    w1 = jnp.asarray(params["w1"], jnp.float32)
    nhid = w1.shape[1]
    h5 = NCHAN * nhid
    # Block-diagonal W1 so all 5 shared-weight channel GEMMs fuse into one pass.
    w1_bd = jnp.kron(jnp.eye(NCHAN, dtype=jnp.float32), w1)                 # (200, 5*nhid)
    b1_t = jnp.tile(jnp.asarray(params["b1"], jnp.float32), NCHAN).reshape(1, h5)
    w2 = jnp.asarray(params["w2"], jnp.float32)
    nclass = w2.shape[1]
    w2_p = jnp.zeros((h5, nc_pad), jnp.float32).at[:, :nclass].set(w2)
    b2_p = jnp.zeros((1, nc_pad), jnp.float32).at[0, :nclass].set(
        jnp.asarray(params["b2"], jnp.float32))
    conv_w = jnp.asarray(params["conv_w"], jnp.float32).reshape(4)
    conv_b = jnp.asarray(params["conv_b"], jnp.float32).reshape(1)
    return dict(w1_bd=w1_bd, b1_t=b1_t, w2_p=w2_p, b2_p=b2_p,
                conv_w=conv_w, conv_b=conv_b)


def _forward_impl(x, adj_nchw, lay, nclass):
    N = x.shape[0]

    block_i, block_j = _pick_phase2_blocks(N)
    n_rows = _round_up(N, block_i)     # adj / output row padding
    n_cols = _round_up(N, block_j)     # contraction (s-row) padding
    p1_block = _pick_phase1_block(n_cols)

    x_p = jnp.pad(x.astype(jnp.float32), ((0, n_cols - N), (0, 0)))
    # adj[0] assumes the adjacency batch dim is 1, matching `self.conv1(adj)[0, 0]`.
    # adj is stored/streamed as bf16: the dominant HBM traffic of phase 2 is halved.
    adj4 = adj_nchw[0].astype(jnp.bfloat16)
    # TODO(synk): this zero-pad materializes a copy when N is not a tile multiple;
    #             for large production N pick N as a multiple of (block_i, block_j)
    #             (the pads below then become no-ops under jit).
    adj4_p = jnp.pad(adj4, ((0, 0), (0, n_rows - N), (0, n_cols - N)))

    s = _phase1_support(x_p, lay["w1_bd"], lay["b1_t"], lay["w2_p"], N, p1_block)
    out_p = _phase2_aggregate(adj4_p, s, lay["conv_w"], lay["conv_b"],
                              lay["b2_p"], block_i, block_j)
    return out_p[:N, :nclass]


def make_gcn_forward(params):
    """Precompute derived weight layouts once; return a jitted forward(x, adj_nchw)."""
    nclass = params["w2"].shape[1]
    nc_pad = _round_up(nclass, LANE)
    lay = _derived_layouts(params, nc_pad)          # computed eagerly, once

    @jax.jit
    def forward(x, adj_nchw):
        return _forward_impl(x, adj_nchw, lay, nclass)

    return forward


def gcn_multi_channel(x, adj_nchw, params):
    """Convenience one-shot wrapper (rebuilds the derived layouts each call)."""
    nclass = params["w2"].shape[1]
    lay = _derived_layouts(params, _round_up(nclass, LANE))
    return _forward_impl(x, adj_nchw, lay, nclass)


# ----------------------------------------------------------------------------
# Reference / init / demo
# ----------------------------------------------------------------------------
def _init_params(key, nhid, nclass):
    """Deterministic init matching the PyTorch shapes (uniform, stdv = 1/sqrt(fan))."""
    ks = jax.random.split(key, 6)
    stdv1 = 1.0 / jnp.sqrt(jnp.float32(nhid))
    stdv2 = 1.0 / jnp.sqrt(jnp.float32(nclass))
    stdvc = 1.0 / jnp.sqrt(jnp.float32(4))
    return {
        "w1": jax.random.uniform(ks[0], (NFEAT, nhid), jnp.float32, -stdv1, stdv1),
        "b1": jax.random.uniform(ks[1], (nhid,), jnp.float32, -stdv1, stdv1),
        "w2": jax.random.uniform(ks[2], (NCHAN * nhid, nclass), jnp.float32, -stdv2, stdv2),
        "b2": jax.random.uniform(ks[3], (nclass,), jnp.float32, -stdv2, stdv2),
        "conv_w": jax.random.uniform(ks[4], (1, 4, 1, 1), jnp.float32, -stdvc, stdvc),
        "conv_b": jax.random.uniform(ks[5], (1,), jnp.float32, -stdvc, stdvc),
    }


def _ref_forward(x, adj_nchw, p, adj_dtype=jnp.float32):
    """Pure-JAX reference mirroring the PyTorch forward (eval mode), f32 math."""
    with jax.default_matmul_precision("float32"):
        adj4 = adj_nchw[0].astype(adj_dtype).astype(jnp.float32)
        adj = jnp.einsum("c,cij->ij", p["conv_w"].reshape(4), adj4) + p["conv_b"][0]
        hs = [jax.nn.relu(jnp.dot(x[:, NFEAT * k:NFEAT * (k + 1)], p["w1"]) + p["b1"])
              for k in range(NCHAN)]
        h = jnp.concatenate(hs, axis=1)
        return jnp.dot(adj, jnp.dot(h, p["w2"])) + p["b2"]


if __name__ == "__main__":
    N, nhid, nclass = 16, 16, 8
    key = jax.random.PRNGKey(0)
    kx, kadj, kp = jax.random.split(key, 3)

    x = jax.random.normal(kx, (N, NCHAN * NFEAT), dtype=jnp.float32)    # (16, 200)
    adj = jax.random.normal(kadj, (1, 4, N, N), dtype=jnp.float32)      # NCHW
    params = _init_params(kp, nhid, nclass)

    forward = make_gcn_forward(params)
    out = jax.block_until_ready(forward(x, adj))
    assert out.shape == (N, nclass)

    # Tight check: reference that also quantizes adj to bf16 (isolates kernel logic
    # from the deliberate bf16 adjacency storage).
    ref_bf16 = _ref_forward(x, adj, params, adj_dtype=jnp.bfloat16)
    assert jnp.allclose(out, ref_bf16, atol=2e-3, rtol=2e-3), "mismatch vs bf16-adj reference"

    # Loose check: exact f32 PyTorch-equivalent forward (bf16-adj quantization error).
    ref_f32 = _ref_forward(x, adj, params, adj_dtype=jnp.float32)
    assert jnp.allclose(out, ref_f32, atol=5e-2, rtol=5e-2), "mismatch vs f32 reference"

    print("KERNEL_OK")
</pallas_src>

<mosaic_0001>
module attributes {stable_mosaic.version = 11 : i64} {
  func.func @kernel(%arg0: i32, %arg1: memref<128x200xf32, #tpu.memory_space<vmem>>, %arg2: memref<200x80xf32, #tpu.memory_space<vmem>>, %arg3: memref<1x80xf32, #tpu.memory_space<vmem>>, %arg4: memref<80x128xf32, #tpu.memory_space<vmem>>, %arg5: memref<128x128xf32, #tpu.memory_space<vmem>>) attributes {dimension_semantics = [#tpu.dimension_semantics<parallel>], iteration_bounds = array<i64: 1>, scalar_prefetch = 0 : i64, scratch_operands = 0 : i64, tpu.core_type = #tpu.core_type<tc>, window_params = [{transform_indices = @transform_0, window_bounds = array<i64: 128, 200>}, {pipeline_mode = #tpu.pipeline_mode<synchronous>, transform_indices = @transform_1, window_bounds = array<i64: 200, 80>}, {pipeline_mode = #tpu.pipeline_mode<synchronous>, transform_indices = @transform_2, window_bounds = array<i64: 1, 80>}, {pipeline_mode = #tpu.pipeline_mode<synchronous>, transform_indices = @transform_3, window_bounds = array<i64: 80, 128>}, {transform_indices = @transform_4, window_bounds = array<i64: 128, 128>}]} {
    %c0 = arith.constant 0 : index
    %c0_0 = arith.constant 0 : index
    %0 = vector.load %arg1[%c0, %c0_0] : memref<128x200xf32, #tpu.memory_space<vmem>>, vector<128x200xf32>
    %c0_1 = arith.constant 0 : index
    %c0_2 = arith.constant 0 : index
    %1 = vector.load %arg2[%c0_1, %c0_2] : memref<200x80xf32, #tpu.memory_space<vmem>>, vector<200x80xf32>
    %cst = arith.constant dense<0.000000e+00> : vector<128x80xf32>
    %2 = tpu.matmul %0, %1, %cst {dimension_numbers = #tpu.dot_dimension_numbers<[1], [0], [0], [1], [0, 0, 1, 1], [], []>} : vector<128x200xf32>, vector<200x80xf32>, vector<128x80xf32> -> vector<128x80xf32>
    %c0_3 = arith.constant 0 : index
    %c0_4 = arith.constant 0 : index
    %3 = vector.load %arg3[%c0_3, %c0_4] : memref<1x80xf32, #tpu.memory_space<vmem>>, vector<1x80xf32>
    %4 = vector.broadcast %3 : vector<1x80xf32> to vector<128x80xf32>
    %5 = arith.addf %2, %4 : vector<128x80xf32>
    %cst_5 = arith.constant 0.000000e+00 : f32
    %6 = vector.broadcast %cst_5 : f32 to vector<128x80xf32>
    %7 = arith.maximumf %5, %6 : vector<128x80xf32>
    %c0_6 = arith.constant 0 : index
    %c0_7 = arith.constant 0 : index
    %8 = vector.load %arg4[%c0_6, %c0_7] : memref<80x128xf32, #tpu.memory_space<vmem>>, vector<80x128xf32>
    %cst_8 = arith.constant dense<0.000000e+00> : vector<128x128xf32>
    %9 = tpu.matmul %7, %8, %cst_8 {dimension_numbers = #tpu.dot_dimension_numbers<[1], [0], [0], [1], [0, 0, 1, 1], [], []>} : vector<128x80xf32>, vector<80x128xf32>, vector<128x128xf32> -> vector<128x128xf32>
    %c0_i32 = arith.constant 0 : i32
    %10 = arith.cmpi ne, %arg0, %c0_i32 : i32
    %11 = arith.extui %10 : i1 to i32
    %c0_i32_9 = arith.constant 0 : i32
    %12 = arith.cmpi ne, %11, %c0_i32_9 : i32
    scf.if %12 {
      %c0_12 = arith.constant 0 : index
      %c0_13 = arith.constant 0 : index
      %16 = vector.load %arg5[%c0_12, %c0_13] : memref<128x128xf32, #tpu.memory_space<vmem>>, vector<128x128xf32>
      tpu.vector_store %arg5[%c0_12, %c0_13], %9 {strides = array<i32>} : memref<128x128xf32, #tpu.memory_space<vmem>>, vector<128x128xf32>,
    } else {
    }
    %c0_i32_10 = arith.constant 0 : i32
    %13 = arith.cmpi eq, %arg0, %c0_i32_10 : i32
    %14 = arith.extui %13 : i1 to i32
    %c0_i32_11 = arith.constant 0 : i32
    %15 = arith.cmpi ne, %14, %c0_i32_11 : i32
    scf.if %15 {
      %16 = tpu.iota {dimensions = array<i32: 0>} : vector<128x128xi32>
      %c128_i32 = arith.constant 128 : i32
      %17 = arith.muli %arg0, %c128_i32 : i32
      %18 = vector.broadcast %17 : i32 to vector<128x128xi32>
      %19 = arith.addi %16, %18 : vector<128x128xi32>
      %c16_i32 = arith.constant 16 : i32
      %20 = vector.broadcast %c16_i32 : i32 to vector<128x128xi32>
      %21 = arith.cmpi slt, %19, %20 : vector<128x128xi32>
      %cst_12 = arith.constant 0.000000e+00 : f32
      %22 = vector.broadcast %cst_12 : f32 to vector<128x128xf32>
      %23 = arith.select %21, %9, %22 : vector<128x128xi1>, vector<128x128xf32>
      %c0_13 = arith.constant 0 : index
      %c0_14 = arith.constant 0 : index
      %24 = vector.load %arg5[%c0_13, %c0_14] : memref<128x128xf32, #tpu.memory_space<vmem>>, vector<128x128xf32>
      tpu.vector_store %arg5[%c0_13, %c0_14], %23 {strides = array<i32>} : memref<128x128xf32, #tpu.memory_space<vmem>>, vector<128x128xf32>,
    } else {
    }
    return
  }
  func.func @transform_0(%arg0: i32) -> (i32, i32) {
    %c0_i32 = arith.constant 0 : i32
    %c0_i32_0 = arith.constant 0 : i32
    return %arg0, %c0_i32 : i32, i32
  }
  func.func @transform_1(%arg0: i32) -> (i32, i32) {
    %c0_i32 = arith.constant 0 : i32
    %c0_i32_0 = arith.constant 0 : i32
    %c0_i32_1 = arith.constant 0 : i32
    return %c0_i32, %c0_i32_0 : i32, i32
  }
  func.func @transform_2(%arg0: i32) -> (i32, i32) {
    %c0_i32 = arith.constant 0 : i32
    %c0_i32_0 = arith.constant 0 : i32
    %c0_i32_1 = arith.constant 0 : i32
    return %c0_i32, %c0_i32_0 : i32, i32
  }
  func.func @transform_3(%arg0: i32) -> (i32, i32) {
    %c0_i32 = arith.constant 0 : i32
    %c0_i32_0 = arith.constant 0 : i32
    %c0_i32_1 = arith.constant 0 : i32
    return %c0_i32, %c0_i32_0 : i32, i32
  }
  func.func @transform_4(%arg0: i32) -> (i32, i32) {
    %c0_i32 = arith.constant 0 : i32
    %c0_i32_0 = arith.constant 0 : i32
    return %arg0, %c0_i32 : i32, i32
  }
}

module attributes {stable_mosaic.version = 11 : i64} {
  func.func @kernel(%arg0: i32, %arg1: i32, %arg2: memref<4xf32, #tpu.memory_space<smem>>, %arg3: memref<1xf32, #tpu.memory_space<smem>>, %arg4: memref<4x128x128xbf16, #tpu.memory_space<vmem>>, %arg5: memref<128x128xf32, #tpu.memory_space<vmem>>, %arg6: memref<1x128xf32, #tpu.memory_space<vmem>>, %arg7: memref<128x128xf32, #tpu.memory_space<vmem>>, %arg8: memref<128x128xf32, #tpu.memory_space<vmem>>) attributes {dimension_semantics = [#tpu.dimension_semantics<parallel>, #tpu.dimension_semantics<arbitrary>], iteration_bounds = array<i64: 1, 1>, scalar_prefetch = 0 : i64, scratch_operands = 1 : i64, tpu.core_type = #tpu.core_type<tc>, window_params = [{transform_indices = @transform_0, window_bounds = array<i64: 4>}, {transform_indices = @transform_1, window_bounds = array<i64: 1>}, {transform_indices = @transform_2, window_bounds = array<i64: 4, 128, 128>}, {pipeline_mode = #tpu.pipeline_mode<synchronous>, transform_indices = @transform_3, window_bounds = array<i64: 128, 128>}, {pipeline_mode = #tpu.pipeline_mode<synchronous>, transform_indices = @transform_4, window_bounds = array<i64: 1, 128>}, {transform_indices = @transform_5, window_bounds = array<i64: 128, 128>}]} {
    %c0_i32 = arith.constant 0 : i32
    %0 = arith.cmpi eq, %arg1, %c0_i32 : i32
    %1 = arith.extui %0 : i1 to i32
    %c0_i32_0 = arith.constant 0 : i32
    %2 = arith.cmpi ne, %1, %c0_i32_0 : i32
    scf.if %2 {
      %cst_21 = arith.constant 0.000000e+00 : f32
      %44 = vector.broadcast %cst_21 : f32 to vector<128x128xf32>
      %c0_22 = arith.constant 0 : index
      %c0_23 = arith.constant 0 : index
      %45 = vector.load %arg8[%c0_22, %c0_23] : memref<128x128xf32, #tpu.memory_space<vmem>>, vector<128x128xf32>
      tpu.vector_store %arg8[%c0_22, %c0_23], %44 {strides = array<i32>} : memref<128x128xf32, #tpu.memory_space<vmem>>, vector<128x128xf32>,
    } else {
    }
    %c0 = arith.constant 0 : index
    %3 = memref.load %arg2[%c0] : memref<4xf32, #tpu.memory_space<smem>>
    %c0_1 = arith.constant 0 : index
    %c0_2 = arith.constant 0 : index
    %c0_3 = arith.constant 0 : index
    %4 = vector.load %arg4[%c0_1, %c0_2, %c0_3] : memref<4x128x128xbf16, #tpu.memory_space<vmem>>, vector<1x128x128xbf16>
    %5 = vector.shape_cast %4 : vector<1x128x128xbf16> to vector<128x128xbf16>
    %6 = arith.extf %5 : vector<128x128xbf16> to vector<128x128xf32>
    %7 = vector.broadcast %3 : f32 to vector<128x128xf32>
    %8 = arith.mulf %7, %6 : vector<128x128xf32>
    %c1 = arith.constant 1 : index
    %9 = memref.load %arg2[%c1] : memref<4xf32, #tpu.memory_space<smem>>
    %c1_4 = arith.constant 1 : index
    %c0_5 = arith.constant 0 : index
    %c0_6 = arith.constant 0 : index
    %10 = vector.load %arg4[%c1_4, %c0_5, %c0_6] : memref<4x128x128xbf16, #tpu.memory_space<vmem>>, vector<1x128x128xbf16>
    %11 = vector.shape_cast %10 : vector<1x128x128xbf16> to vector<128x128xbf16>
    %12 = arith.extf %11 : vector<128x128xbf16> to vector<128x128xf32>
    %13 = vector.broadcast %9 : f32 to vector<128x128xf32>
    %14 = arith.mulf %13, %12 : vector<128x128xf32>
    %15 = arith.addf %8, %14 : vector<128x128xf32>
    %c2 = arith.constant 2 : index
    %16 = memref.load %arg2[%c2] : memref<4xf32, #tpu.memory_space<smem>>
    %c2_7 = arith.constant 2 : index
    %c0_8 = arith.constant 0 : index
    %c0_9 = arith.constant 0 : index
    %17 = vector.load %arg4[%c2_7, %c0_8, %c0_9] : memref<4x128x128xbf16, #tpu.memory_space<vmem>>, vector<1x128x128xbf16>
    %18 = vector.shape_cast %17 : vector<1x128x128xbf16> to vector<128x128xbf16>
    %19 = arith.extf %18 : vector<128x128xbf16> to vector<128x128xf32>
    %20 = vector.broadcast %16 : f32 to vector<128x128xf32>
    %21 = arith.mulf %20, %19 : vector<128x128xf32>
    %c3 = arith.constant 3 : index
    %22 = memref.load %arg2[%c3] : memref<4xf32, #tpu.memory_space<smem>>
    %c3_10 = arith.constant 3 : index
    %c0_11 = arith.constant 0 : index
    %c0_12 = arith.constant 0 : index
    %23 = vector.load %arg4[%c3_10, %c0_11, %c0_12] : memref<4x128x128xbf16, #tpu.memory_space<vmem>>, vector<1x128x128xbf16>
    %24 = vector.shape_cast %23 : vector<1x128x128xbf16> to vector<128x128xbf16>
    %25 = arith.extf %24 : vector<128x128xbf16> to vector<128x128xf32>
    %26 = vector.broadcast %22 : f32 to vector<128x128xf32>
    %27 = arith.mulf %26, %25 : vector<128x128xf32>
    %28 = arith.addf %21, %27 : vector<128x128xf32>
    %29 = arith.addf %15, %28 : vector<128x128xf32>
    %c0_13 = arith.constant 0 : index
    %30 = memref.load %arg3[%c0_13] : memref<1xf32, #tpu.memory_space<smem>>
    %31 = vector.broadcast %30 : f32 to vector<128x128xf32>
    %32 = arith.addf %29, %31 : vector<128x128xf32>
    %c128_i32 = arith.constant 128 : i32
    %33 = arith.muli %arg1, %c128_i32 : i32
    %34 = tpu.assume_multiple %33, 128 : i32
    %35 = arith.index_cast %34 : i32 to index
    %c0_14 = arith.constant 0 : index
    %36 = vector.load %arg5[%35, %c0_14] : memref<128x128xf32, #tpu.memory_space<vmem>>, vector<128x128xf32>
    %c0_15 = arith.constant 0 : index
    %c0_16 = arith.constant 0 : index
    %37 = vector.load %arg8[%c0_15, %c0_16] : memref<128x128xf32, #tpu.memory_space<vmem>>, vector<128x128xf32>
    %cst = arith.constant dense<0.000000e+00> : vector<128x128xf32>
    %38 = tpu.matmul %32, %36, %cst {dimension_numbers = #tpu.dot_dimension_numbers<[1], [0], [0], [1], [0, 0, 1, 1], [], []>} : vector<128x128xf32>, vector<128x128xf32>, vector<128x128xf32> -> vector<128x128xf32>
    %39 = arith.addf %37, %38 : vector<128x128xf32>
    %c0_17 = arith.constant 0 : index
    %c0_18 = arith.constant 0 : index
    %40 = vector.load %arg8[%c0_17, %c0_18] : memref<128x128xf32, #tpu.memory_space<vmem>>, vector<128x128xf32>
    tpu.vector_store %arg8[%c0_17, %c0_18], %39 {strides = array<i32>} : memref<128x128xf32, #tpu.memory_space<vmem>>, vector<128x128xf32>,
    %c0_i32_19 = arith.constant 0 : i32
    %41 = arith.cmpi eq, %arg1, %c0_i32_19 : i32
    %42 = arith.extui %41 : i1 to i32
    %c0_i32_20 = arith.constant 0 : i32
    %43 = arith.cmpi ne, %42, %c0_i32_20 : i32
    scf.if %43 {
      %c0_21 = arith.constant 0 : index
      %c0_22 = arith.constant 0 : index
      %44 = vector.load %arg8[%c0_21, %c0_22] : memref<128x128xf32, #tpu.memory_space<vmem>>, vector<128x128xf32>
      %c0_23 = arith.constant 0 : index
      %c0_24 = arith.constant 0 : index
      %45 = vector.load %arg6[%c0_23, %c0_24] : memref<1x128xf32, #tpu.memory_space<vmem>>, vector<1x128xf32>
      %46 = vector.broadcast %45 : vector<1x128xf32> to vector<128x128xf32>
      %47 = arith.addf %44, %46 : vector<128x128xf32>
      %c0_25 = arith.constant 0 : index
      %c0_26 = arith.constant 0 : index
      %48 = vector.load %arg7[%c0_25, %c0_26] : memref<128x128xf32, #tpu.memory_space<vmem>>, vector<128x128xf32>
      tpu.vector_store %arg7[%c0_25, %c0_26], %47 {strides = array<i32>} : memref<128x128xf32, #tpu.memory_space<vmem>>, vector<128x128xf32>,
    } else {
    }
    return
  }
  func.func @transform_0(%arg0: i32, %arg1: i32) -> i32 {
    %c0_i32 = arith.constant 0 : i32
    %c0_i32_0 = arith.constant 0 : i32
    return %c0_i32 : i32
  }
  func.func @transform_1(%arg0: i32, %arg1: i32) -> i32 {
    %c0_i32 = arith.constant 0 : i32
    %c0_i32_0 = arith.constant 0 : i32
    return %c0_i32 : i32
  }
  func.func @transform_2(%arg0: i32, %arg1: i32) -> (i32, i32, i32) {
    %c0_i32 = arith.constant 0 : i32
    %c0_i32_0 = arith.constant 0 : i32
    return %c0_i32, %arg0, %arg1 : i32, i32, i32
  }
  func.func @transform_3(%arg0: i32, %arg1: i32) -> (i32, i32) {
    %c0_i32 = arith.constant 0 : i32
    %c0_i32_0 = arith.constant 0 : i32
    %c0_i32_1 = arith.constant 0 : i32
    return %c0_i32, %c0_i32_0 : i32, i32
  }
  func.func @transform_4(%arg0: i32, %arg1: i32) -> (i32, i32) {
    %c0_i32 = arith.constant 0 : i32
    %c0_i32_0 = arith.constant 0 : i32
    %c0_i32_1 = arith.constant 0 : i32
    return %c0_i32, %c0_i32_0 : i32, i32
  }
  func.func @transform_5(%arg0: i32, %arg1: i32) -> (i32, i32) {
    %c0_i32 = arith.constant 0 : i32
    %c0_i32_0 = arith.constant 0 : i32
    return %arg0, %c0_i32 : i32, i32
  }
}

</mosaic_0001>

<llo_original>
// kernel: forward.2
$region0: #{forward.2}
  #allocation0 [shape = 'u32[]', space=smem, size = 0x4, offset = 0x4, fixed_abs, tag = 'smem constant byte address 0x4 - core index']
  #allocation1 [shape = 'u32[72,128]{1,0:T(1,128)}', space=vmem, size = 0x9000, scoped, tag = 'internal scratch']
  %s0 = inlined_call_operand.vmem [shape: f32[128,200], index: 0, kind: input, shape index: {}]
  %s1 = inlined_call_operand.vmem [shape: f32[200,80], index: 1, kind: input, shape index: {}]
  %s2 = inlined_call_operand.vmem [shape: f32[1,80], index: 2, kind: input, shape index: {}]
  %s3 = inlined_call_operand.hbm [shape: f32[80,128], index: 3, kind: input, shape index: {}]
  %s4 = inlined_call_operand.vmem [shape: f32[128,128], index: 4, kind: output, shape index: {}]
  %s5 = sld [smem:[#allocation0]]
  $region38: #{forward.2} parent=0
    _
  %s7 = ssub.s32 1, %s5
  %s8 = scalar_select 0, %s7, %s5
  $region1: #{forward.2} parent=0
    #allocation2 [shape = 'u8[40960]{0}', space=vmem, size = 0xa000, scoped, tag = 'input window, operand 3, single buffered']
    #allocation3 [shape = 's32[1]{0}', space=sflag, size = 0x4, scoped, tag = 'scoped memory for forward.2']
    %9 = vsyncpa [#allocation3], 0
    // Predicated region
    $region2: #{forward.2} parent=1 // pred_check
      _
    $region3: #{forward.2} parent=1 // pred_check_branch
      %11 = sbr.rel (0) target = $region5
    $region4: #{forward.2} parent=1 // pred_region
      _
    $region5: #{forward.2} parent=1 // pred_fallthru
      _
    // Predicated region
    $region6: #{forward.2} parent=1 // pred_check
      _
    $region7: #{forward.2} parent=1 // pred_check_branch
      %13 = sbr.rel (0) target = $region9
    $region8: #{forward.2} parent=1 // pred_region
      _
    $region9: #{forward.2} parent=1 // pred_fallthru
      _
    // Predicated region
    $region10: #{forward.2} parent=1 // pred_check
      _
    $region11: #{forward.2} parent=1 // pred_check_branch
      %15 = sbr.rel (0) target = $region13
    $region12: #{forward.2} parent=1 // pred_region
      _
    $region13: #{forward.2} parent=1 // pred_fallthru
      _
    // Predicated region
    $region14: #{forward.2} parent=1 // pred_check
      _
    $region15: #{forward.2} parent=1 // pred_check_branch
      %17 = sbr.rel (0) target = $region17
    $region16: #{forward.2} parent=1 // pred_region
      %19 = vsyncadd [#allocation3], 0
      %s20 = sshll.u32 %s3, 4
      %s21 = int_to_ptr.hbm [resolvable:$true] %s20
      %s22 = sshll.u32 [#allocation2], 4
      %s23 = int_to_ptr.vmem [resolvable:$true] %s22
      %28 = dma.hbm_to_vmem [thread:$0]  %s21, 1280, %s23, [#allocation3], 128, 128, 8
    $region17: #{forward.2} parent=1 // pred_fallthru
      _
    // Predicated region
    $region18: #{forward.2} parent=1 // pred_check
      _
    $region19: #{forward.2} parent=1 // pred_check_branch
      %30 = sbr.rel (0) target = $region21
    $region20: #{forward.2} parent=1 // pred_region
      %32 = dma.done [#allocation3], 1280
    $region21: #{forward.2} parent=1 // pred_fallthru
      _
    %v33 = vld [vmem:[%s0] sm:$0xff]
    %v34 = vld [vmem:[%s0 + $0x8] sm:$0xff]
    %v35 = vld [vmem:[%s0 + $0x10] sm:$0xff]
    %v36 = vld [vmem:[%s0 + $0x18] sm:$0xff]
    %v37 = vld [vmem:[%s0 + $0x20] sm:$0xff]
    %v38 = vld [vmem:[%s0 + $0x28] sm:$0xff]
    %v39 = vld [vmem:[%s0 + $0x30] sm:$0xff]
    %v40 = vld [vmem:[%s0 + $0x38] sm:$0xff]
    %v41 = vld [vmem:[%s0 + $0x40] sm:$0xff]
    %v42 = vld [vmem:[%s0 + $0x48] sm:$0xff]
    %v43 = vld [vmem:[%s0 + $0x50] sm:$0xff]
    %v44 = vld [vmem:[%s0 + $0x58] sm:$0xff]
    %v45 = vld [vmem:[%s0 + $0x60] sm:$0xff]
    %v46 = vld [vmem:[%s0 + $0x68] sm:$0xff]
    %v47 = vld [vmem:[%s0 + $0x70] sm:$0xff]
    %v48 = vld [vmem:[%s0 + $0x78] sm:$0xff]
    %v49 = vld [vmem:[%s0 + $0x80] sm:$0xff]
    %v50 = vld [vmem:[%s0 + $0x88] sm:$0xff]
    %v51 = vld [vmem:[%s0 + $0x90] sm:$0xff]
    %v52 = vld [vmem:[%s0 + $0x98] sm:$0xff]
    %v53 = vld [vmem:[%s0 + $0xa0] sm:$0xff]
    %v54 = vld [vmem:[%s0 + $0xa8] sm:$0xff]
    %v55 = vld [vmem:[%s0 + $0xb0] sm:$0xff]
    %v56 = vld [vmem:[%s0 + $0xb8] sm:$0xff]
    %v57 = vld [vmem:[%s0 + $0xc0] sm:$0xff]
    %v58 = vld [vmem:[%s0 + $0xc8] sm:$0xff]
    %v59 = vld [vmem:[%s0 + $0xd0] sm:$0xff]
    %v60 = vld [vmem:[%s0 + $0xd8] sm:$0xff]
    %v61 = vld [vmem:[%s0 + $0xe0] sm:$0xff]
    %v62 = vld [vmem:[%s0 + $0xe8] sm:$0xff]
    %v63 = vld [vmem:[%s0 + $0xf0] sm:$0xff]
    %v64 = vld [vmem:[%s0 + $0xf8] sm:$0xff]
    %v65 = vld [vmem:[%s1] sm:$0xff]
    %v66 = vld [vmem:[%s1 + $0x8] sm:$0xff]
    %v67 = vld [vmem:[%s1 + $0x10] sm:$0xff]
    %v68 = vld [vmem:[%s1 + $0x18] sm:$0xff]
    %v69 = vld [vmem:[%s1 + $0x20] sm:$0xff]
    %v70 = vld [vmem:[%s1 + $0x28] sm:$0xff]
    %v71 = vld [vmem:[%s1 + $0x30] sm:$0xff]
    %v72 = vld [vmem:[%s1 + $0x38] sm:$0xff]
    %v73 = vld [vmem:[%s1 + $0x40] sm:$0xff]
    %v74 = vld [vmem:[%s1 + $0x48] sm:$0xff]
    %v75 = vld [vmem:[%s1 + $0x50] sm:$0xff]
    %v76 = vld [vmem:[%s1 + $0x58] sm:$0xff]
    %v77 = vld [vmem:[%s1 + $0x60] sm:$0xff]
    %v78 = vld [vmem:[%s1 + $0x68] sm:$0xff]
    %v79 = vld [vmem:[%s1 + $0x70] sm:$0xff]
    %v80 = vld [vmem:[%s1 + $0x78] sm:$0xff]
    %v81 = vld [vmem:[%s1 + $0x80] sm:$0xff]
    %v82 = vld [vmem:[%s1 + $0x88] sm:$0xff]
    %v83 = vld [vmem:[%s1 + $0x90] sm:$0xff]
    %v84 = vld [vmem:[%s1 + $0x98] sm:$0xff]
    %v85 = vld [vmem:[%s1 + $0xa0] sm:$0xff]
    %v86 = vld [vmem:[%s1 + $0xa8] sm:$0xff]
    %v87 = vld [vmem:[%s1 + $0xb0] sm:$0xff]
    %v88 = vld [vmem:[%s1 + $0xb8] sm:$0xff]
    %v89 = vld [vmem:[%s1 + $0xc0] sm:$0xff]
    %v90 = vld [vmem:[%s2] sm:$0x1]
    %v92 = vperm.slane %v90, 0
    %vm94 = vcmask 588800
    %v96 = vsel %vm94, %v34, 0
    %v99 = vsel %vm94, %v36, 0
    %v102 = vsel %vm94, %v38, 0
    %v105 = vsel %vm94, %v40, 0
    %v108 = vsel %vm94, %v42, 0
    %v111 = vsel %vm94, %v44, 0
    %v114 = vsel %vm94, %v46, 0
    %v117 = vsel %vm94, %v48, 0
    %v120 = vsel %vm94, %v50, 0
    %v123 = vsel %vm94, %v52, 0
    %v126 = vsel %vm94, %v54, 0
    %v129 = vsel %vm94, %v56, 0
    %v132 = vsel %vm94, %v58, 0
    %v135 = vsel %vm94, %v60, 0
    %v138 = vsel %vm94, %v62, 0
    %v141 = vsel %vm94, %v64, 0
    %143 = vmatpush.msra.mxu0 %v80
    %144 = vmatpush.msra.mxu0 %v79
    %145 = vmatpush.msra.mxu0 %v78
    %146 = vmatpush.msra.mxu0 %v77
    %147 = vmatpush.msra.mxu0 %v76
    %148 = vmatpush.msra.mxu0 %v75
    %149 = vmatpush.msra.mxu0 %v74
    %150 = vmatpush.msra.mxu0 %v73
    %151 = vmatpush.msra.mxu0 %v72
    %152 = vmatpush.msra.mxu0 %v71
    %153 = vmatpush.msra.mxu0 %v70
    %154 = vmatpush.msra.mxu0 %v69
    %155 = vmatpush.msra.mxu0 %v68
    %156 = vmatpush.msra.mxu0 %v67
    %157 = vmatpush.msra.mxu0 %v66
    %158 = vmatpush.msra.mxu0 %v65
    %159 = vmatmul.f32.gmra.mxu0 %v33
    %v160 = vpop.f32.mrf.mxu0
    %v161 = vadd.f32 %v92, %v160
    %162 = vmatmul.f32.gmra.mxu0 %v35
    %v163 = vpop.f32.mrf.mxu0
    %v164 = vadd.f32 %v92, %v163
    %165 = vmatmul.f32.gmra.mxu0 %v37
    %v166 = vpop.f32.mrf.mxu0
    %v167 = vadd.f32 %v92, %v166
    %168 = vmatmul.f32.gmra.mxu0 %v39
    %v169 = vpop.f32.mrf.mxu0
    %v170 = vadd.f32 %v92, %v169
    %171 = vmatmul.f32.gmra.mxu0 %v41
    %v172 = vpop.f32.mrf.mxu0
    %v173 = vadd.f32 %v92, %v172
    %174 = vmatmul.f32.gmra.mxu0 %v43
    %v175 = vpop.f32.mrf.mxu0
    %v176 = vadd.f32 %v92, %v175
    %177 = vmatmul.f32.gmra.mxu0 %v45
    %v178 = vpop.f32.mrf.mxu0
    %v179 = vadd.f32 %v92, %v178
    %180 = vmatmul.f32.gmra.mxu0 %v47
    %v181 = vpop.f32.mrf.mxu0
    %v182 = vadd.f32 %v92, %v181
    %183 = vmatmul.f32.gmra.mxu0 %v49
    %v184 = vpop.f32.mrf.mxu0
    %v185 = vadd.f32 %v92, %v184
    %186 = vmatmul.f32.gmra.mxu0 %v51
    %v187 = vpop.f32.mrf.mxu0
    %v188 = vadd.f32 %v92, %v187
    %189 = vmatmul.f32.gmra.mxu0 %v53
    %v190 = vpop.f32.mrf.mxu0
    %v191 = vadd.f32 %v92, %v190
    %192 = vmatmul.f32.gmra.mxu0 %v55
    %v193 = vpop.f32.mrf.mxu0
    %v194 = vadd.f32 %v92, %v193
    %195 = vmatmul.f32.gmra.mxu0 %v57
    %v196 = vpop.f32.mrf.mxu0
    %v197 = vadd.f32 %v92, %v196
    %198 = vmatmul.f32.gmra.mxu0 %v59
    %v199 = vpop.f32.mrf.mxu0
    %v200 = vadd.f32 %v92, %v199
    %201 = vmatmul.f32.gmra.mxu0 %v61
    %v202 = vpop.f32.mrf.mxu0
    %v203 = vadd.f32 %v92, %v202
    %204 = vmatmul.f32.gmra.mxu0 %v63
    %v205 = vpop.f32.mrf.mxu0
    %v206 = vadd.f32 %v92, %v205
    %207 = vdwg.mxu0
    %208 = vmatpush.msra.mxu0 0.0
    %209 = vmatpush.msra.mxu0 0.0
    %210 = vmatpush.msra.mxu0 0.0
    %211 = vmatpush.msra.mxu0 0.0
    %212 = vmatpush.msra.mxu0 0.0
    %213 = vmatpush.msra.mxu0 0.0
    %214 = vmatpush.msra.mxu0 0.0
    %215 = vmatpush.msra.mxu0 %v89
    %216 = vmatpush.msra.mxu0 %v88
    %217 = vmatpush.msra.mxu0 %v87
    %218 = vmatpush.msra.mxu0 %v86
    %219 = vmatpush.msra.mxu0 %v85
    %220 = vmatpush.msra.mxu0 %v84
    %221 = vmatpush.msra.mxu0 %v83
    %222 = vmatpush.msra.mxu0 %v82
    %223 = vmatpush.msra.mxu0 %v81
    %224 = vmatmul.f32.gmra.mxu0 %v96
    %v225 = vpop.f32.mrf.mxu0
    %v226 = vadd.f32 %v161, %v225
    %227 = vmatmul.f32.gmra.mxu0 %v99
    %v228 = vpop.f32.mrf.mxu0
    %v229 = vadd.f32 %v164, %v228
    %230 = vmatmul.f32.gmra.mxu0 %v102
    %v231 = vpop.f32.mrf.mxu0
    %v232 = vadd.f32 %v167, %v231
    %233 = vmatmul.f32.gmra.mxu0 %v105
    %v234 = vpop.f32.mrf.mxu0
    %v235 = vadd.f32 %v170, %v234
    %236 = vmatmul.f32.gmra.mxu0 %v108
    %v237 = vpop.f32.mrf.mxu0
    %v238 = vadd.f32 %v173, %v237
    %239 = vmatmul.f32.gmra.mxu0 %v111
    %v240 = vpop.f32.mrf.mxu0
    %v241 = vadd.f32 %v176, %v240
    %242 = vmatmul.f32.gmra.mxu0 %v114
    %v243 = vpop.f32.mrf.mxu0
    %v244 = vadd.f32 %v179, %v243
    %245 = vmatmul.f32.gmra.mxu0 %v117
    %v246 = vpop.f32.mrf.mxu0
    %v247 = vadd.f32 %v182, %v246
    %248 = vmatmul.f32.gmra.mxu0 %v120
    %v249 = vpop.f32.mrf.mxu0
    %v250 = vadd.f32 %v185, %v249
    %251 = vmatmul.f32.gmra.mxu0 %v123
    %v252 = vpop.f32.mrf.mxu0
    %v253 = vadd.f32 %v188, %v252
    %254 = vmatmul.f32.gmra.mxu0 %v126
    %v255 = vpop.f32.mrf.mxu0
    %v256 = vadd.f32 %v191, %v255
    %257 = vmatmul.f32.gmra.mxu0 %v129
    %v258 = vpop.f32.mrf.mxu0
    %v259 = vadd.f32 %v194, %v258
    %260 = vmatmul.f32.gmra.mxu0 %v132
    %v261 = vpop.f32.mrf.mxu0
    %v262 = vadd.f32 %v197, %v261
    %263 = vmatmul.f32.gmra.mxu0 %v135
    %v264 = vpop.f32.mrf.mxu0
    %v265 = vadd.f32 %v200, %v264
    %266 = vmatmul.f32.gmra.mxu0 %v138
    %v267 = vpop.f32.mrf.mxu0
    %v268 = vadd.f32 %v203, %v267
    %269 = vmatmul.f32.gmra.mxu0 %v141
    %v270 = vpop.f32.mrf.mxu0
    %v271 = vadd.f32 %v206, %v270
    %272 = vdwg.mxu0
    %v273 = vmax.f32 %v226, 0.0
    %v274 = vmax.f32 %v229, 0.0
    %v275 = vmax.f32 %v232, 0.0
    %v276 = vmax.f32 %v235, 0.0
    %v277 = vmax.f32 %v238, 0.0
    %v278 = vmax.f32 %v241, 0.0
    %v279 = vmax.f32 %v244, 0.0
    %v280 = vmax.f32 %v247, 0.0
    %v281 = vmax.f32 %v250, 0.0
    %v282 = vmax.f32 %v253, 0.0
    %v283 = vmax.f32 %v256, 0.0
    %v284 = vmax.f32 %v259, 0.0
    %v285 = vmax.f32 %v262, 0.0
    %v286 = vmax.f32 %v265, 0.0
    %v287 = vmax.f32 %v268, 0.0
    %v288 = vmax.f32 %v271, 0.0
    %v289 = vld [vmem:[#allocation2] sm:$0xff]
    %v290 = vld [vmem:[#allocation2 + $0x8] sm:$0xff]
    %v291 = vld [vmem:[#allocation2 + $0x10] sm:$0xff]
    %v292 = vld [vmem:[#allocation2 + $0x18] sm:$0xff]
    %v293 = vld [vmem:[#allocation2 + $0x20] sm:$0xff]
    %v294 = vld [vmem:[#allocation2 + $0x28] sm:$0xff]
    %v295 = vld [vmem:[#allocation2 + $0x30] sm:$0xff]
    %v296 = vld [vmem:[#allocation2 + $0x38] sm:$0xff]
    %v297 = vld [vmem:[#allocation2 + $0x40] sm:$0xff]
    %v298 = vld [vmem:[#allocation2 + $0x48] sm:$0xff]
    %vm299 = vcmask 654336
    %v301 = vsel %vm299, %v273, 0
    %v304 = vsel %vm299, %v274, 0
    %v307 = vsel %vm299, %v275, 0
    %v310 = vsel %vm299, %v276, 0
    %v313 = vsel %vm299, %v277, 0
    %v316 = vsel %vm299, %v278, 0
    %v319 = vsel %vm299, %v279, 0
    %v322 = vsel %vm299, %v280, 0
    %v325 = vsel %vm299, %v281, 0
    %v328 = vsel %vm299, %v282, 0
    %v331 = vsel %vm299, %v283, 0
    %v334 = vsel %vm299, %v284, 0
    %v337 = vsel %vm299, %v285, 0
    %v340 = vsel %vm299, %v286, 0
    %v343 = vsel %vm299, %v287, 0
    %v346 = vsel %vm299, %v288, 0
    %348 = vmatpush.msra.mxu0 0.0
    %349 = vmatpush.msra.mxu0 0.0
    %350 = vmatpush.msra.mxu0 0.0
    %351 = vmatpush.msra.mxu0 0.0
    %352 = vmatpush.msra.mxu0 0.0
    %353 = vmatpush.msra.mxu0 0.0
    %354 = vmatpush.msra.mxu0 %v298
    %355 = vmatpush.msra.mxu0 %v297
    %356 = vmatpush.msra.mxu0 %v296
    %357 = vmatpush.msra.mxu0 %v295
    %358 = vmatpush.msra.mxu0 %v294
    %359 = vmatpush.msra.mxu0 %v293
    %360 = vmatpush.msra.mxu0 %v292
    %361 = vmatpush.msra.mxu0 %v291
    %362 = vmatpush.msra.mxu0 %v290
    %363 = vmatpush.msra.mxu0 %v289
    %364 = vmatmul.f32.gmra.mxu0 %v301
    %v365 = vpop.f32.mrf.mxu0
    %v366 = vadd.f32 0.0, %v365
    %367 = vmatmul.f32.gmra.mxu0 %v304
    %v368 = vpop.f32.mrf.mxu0
    %v369 = vadd.f32 0.0, %v368
    %370 = vmatmul.f32.gmra.mxu0 %v307
    %v371 = vpop.f32.mrf.mxu0
    %v372 = vadd.f32 0.0, %v371
    %373 = vmatmul.f32.gmra.mxu0 %v310
    %v374 = vpop.f32.mrf.mxu0
    %v375 = vadd.f32 0.0, %v374
    %376 = vmatmul.f32.gmra.mxu0 %v313
    %v377 = vpop.f32.mrf.mxu0
    %v378 = vadd.f32 0.0, %v377
    %379 = vmatmul.f32.gmra.mxu0 %v316
    %v380 = vpop.f32.mrf.mxu0
    %v381 = vadd.f32 0.0, %v380
    %382 = vmatmul.f32.gmra.mxu0 %v319
    %v383 = vpop.f32.mrf.mxu0
    %v384 = vadd.f32 0.0, %v383
    %385 = vmatmul.f32.gmra.mxu0 %v322
    %v386 = vpop.f32.mrf.mxu0
    %v387 = vadd.f32 0.0, %v386
    %388 = vmatmul.f32.gmra.mxu0 %v325
    %v389 = vpop.f32.mrf.mxu0
    %v390 = vadd.f32 0.0, %v389
    %391 = vmatmul.f32.gmra.mxu0 %v328
    %v392 = vpop.f32.mrf.mxu0
    %v393 = vadd.f32 0.0, %v392
    %394 = vmatmul.f32.gmra.mxu0 %v331
    %v395 = vpop.f32.mrf.mxu0
    %v396 = vadd.f32 0.0, %v395
    %397 = vmatmul.f32.gmra.mxu0 %v334
    %v398 = vpop.f32.mrf.mxu0
    %v399 = vadd.f32 0.0, %v398
    %400 = vmatmul.f32.gmra.mxu0 %v337
    %v401 = vpop.f32.mrf.mxu0
    %v402 = vadd.f32 0.0, %v401
    %403 = vmatmul.f32.gmra.mxu0 %v340
    %v404 = vpop.f32.mrf.mxu0
    %v405 = vadd.f32 0.0, %v404
    %406 = vmatmul.f32.gmra.mxu0 %v343
    %v407 = vpop.f32.mrf.mxu0
    %v408 = vadd.f32 0.0, %v407
    %409 = vmatmul.f32.gmra.mxu0 %v346
    %v410 = vpop.f32.mrf.mxu0
    %v411 = vadd.f32 0.0, %v410
    %412 = vdwg.mxu0
    %p413 = scmp.ne.s32.totalorder 0, 0
    // Predicated region
    $region22: #{forward.2} parent=1 // pred_check
      %p414 = pneg %p413
    $region23: #{forward.2} parent=1 // pred_check_branch
      %416 = sbr.rel (%p414) target = $region25
    $region24: #{forward.2} parent=1 // pred_region
      %417 = vst [vmem:[%s4] sm:$0xff] %v366
      %418 = vst [vmem:[%s4 + $0x8] sm:$0xff] %v369
      %419 = vst [vmem:[%s4 + $0x10] sm:$0xff] %v372
      %420 = vst [vmem:[%s4 + $0x18] sm:$0xff] %v375
      %421 = vst [vmem:[%s4 + $0x20] sm:$0xff] %v378
      %422 = vst [vmem:[%s4 + $0x28] sm:$0xff] %v381
      %423 = vst [vmem:[%s4 + $0x30] sm:$0xff] %v384
      %424 = vst [vmem:[%s4 + $0x38] sm:$0xff] %v387
      %425 = vst [vmem:[%s4 + $0x40] sm:$0xff] %v390
      %426 = vst [vmem:[%s4 + $0x48] sm:$0xff] %v393
      %427 = vst [vmem:[%s4 + $0x50] sm:$0xff] %v396
      %428 = vst [vmem:[%s4 + $0x58] sm:$0xff] %v399
      %429 = vst [vmem:[%s4 + $0x60] sm:$0xff] %v402
      %430 = vst [vmem:[%s4 + $0x68] sm:$0xff] %v405
      %431 = vst [vmem:[%s4 + $0x70] sm:$0xff] %v408
      %432 = vst [vmem:[%s4 + $0x78] sm:$0xff] %v411
    $region25: #{forward.2} parent=1 // pred_fallthru
      _
    %p433 = scmp.eq.s32.totalorder 0, 0
    // Predicated region
    $region26: #{forward.2} parent=1 // pred_check
      %p434 = pneg %p433
    $region27: #{forward.2} parent=1 // pred_check_branch
      %436 = sbr.rel (%p434) target = $region29
    $region28: #{forward.2} parent=1 // pred_region
      %v437 = vlaneseq
      %v438 = vshrl.u32 %v437, 7
      %v439 = vadd.s32 %v438, 8
      %v440 = vadd.s32 %v438, 16
      %v441 = vadd.s32 %v438, 24
      %v442 = vadd.s32 %v438, 32
      %v443 = vadd.s32 %v438, 40
      %v444 = vadd.s32 %v438, 48
      %v445 = vadd.s32 %v438, 56
      %v446 = vadd.s32 %v438, 64
      %v447 = vadd.s32 %v438, 72
      %v448 = vadd.s32 %v438, 80
      %v449 = vadd.s32 %v438, 88
      %v450 = vadd.s32 %v438, 96
      %v451 = vadd.s32 %v438, 104
      %v452 = vadd.s32 %v438, 112
      %v453 = vadd.s32 %v438, 120
      %s454 = smul.u32 0, 128
      %v455 = vstv %s454
      %v456 = vadd.s32 %v438, %v455
      %v457 = vadd.s32 %v439, %v455
      %v458 = vadd.s32 %v440, %v455
      %v459 = vadd.s32 %v441, %v455
      %v460 = vadd.s32 %v442, %v455
      %v461 = vadd.s32 %v443, %v455
      %v462 = vadd.s32 %v444, %v455
      %v463 = vadd.s32 %v445, %v455
      %v464 = vadd.s32 %v446, %v455
      %v465 = vadd.s32 %v447, %v455
      %v466 = vadd.s32 %v448, %v455
      %v467 = vadd.s32 %v449, %v455
      %v468 = vadd.s32 %v450, %v455
      %v469 = vadd.s32 %v451, %v455
      %v470 = vadd.s32 %v452, %v455
      %v471 = vadd.s32 %v453, %v455
      %vm472 = vcmp.lt.s32.totalorder %v456, 16
      %vm473 = vcmp.lt.s32.totalorder %v457, 16
      %vm474 = vcmp.lt.s32.totalorder %v458, 16
      %vm475 = vcmp.lt.s32.totalorder %v459, 16
      %vm476 = vcmp.lt.s32.totalorder %v460, 16
      %vm477 = vcmp.lt.s32.totalorder %v461, 16
      %vm478 = vcmp.lt.s32.totalorder %v462, 16
      %vm479 = vcmp.lt.s32.totalorder %v463, 16
      %vm480 = vcmp.lt.s32.totalorder %v464, 16
      %vm481 = vcmp.lt.s32.totalorder %v465, 16
      %vm482 = vcmp.lt.s32.totalorder %v466, 16
      %vm483 = vcmp.lt.s32.totalorder %v467, 16
      %vm484 = vcmp.lt.s32.totalorder %v468, 16
      %vm485 = vcmp.lt.s32.totalorder %v469, 16
      %vm486 = vcmp.lt.s32.totalorder %v470, 16
      %vm487 = vcmp.lt.s32.totalorder %v471, 16
      %v488 = vsel %vm472, %v366, 0.0
      %v489 = vsel %vm473, %v369, 0.0
      %v490 = vsel %vm474, %v372, 0.0
      %v491 = vsel %vm475, %v375, 0.0
      %v492 = vsel %vm476, %v378, 0.0
      %v493 = vsel %vm477, %v381, 0.0
      %v494 = vsel %vm478, %v384, 0.0
      %v495 = vsel %vm479, %v387, 0.0
      %v496 = vsel %vm480, %v390, 0.0
      %v497 = vsel %vm481, %v393, 0.0
      %v498 = vsel %vm482, %v396, 0.0
      %v499 = vsel %vm483, %v399, 0.0
      %v500 = vsel %vm484, %v402, 0.0
      %v501 = vsel %vm485, %v405, 0.0
      %v502 = vsel %vm486, %v408, 0.0
      %v503 = vsel %vm487, %v411, 0.0
      %504 = vst [vmem:[%s4] sm:$0xff] %v488
      %505 = vst [vmem:[%s4 + $0x8] sm:$0xff] %v489
      %506 = vst [vmem:[%s4 + $0x10] sm:$0xff] %v490
      %507 = vst [vmem:[%s4 + $0x18] sm:$0xff] %v491
      %508 = vst [vmem:[%s4 + $0x20] sm:$0xff] %v492
      %509 = vst [vmem:[%s4 + $0x28] sm:$0xff] %v493
      %510 = vst [vmem:[%s4 + $0x30] sm:$0xff] %v494
      %511 = vst [vmem:[%s4 + $0x38] sm:$0xff] %v495
      %512 = vst [vmem:[%s4 + $0x40] sm:$0xff] %v496
      %513 = vst [vmem:[%s4 + $0x48] sm:$0xff] %v497
      %514 = vst [vmem:[%s4 + $0x50] sm:$0xff] %v498
      %515 = vst [vmem:[%s4 + $0x58] sm:$0xff] %v499
      %516 = vst [vmem:[%s4 + $0x60] sm:$0xff] %v500
      %517 = vst [vmem:[%s4 + $0x68] sm:$0xff] %v501
      %518 = vst [vmem:[%s4 + $0x70] sm:$0xff] %v502
      %519 = vst [vmem:[%s4 + $0x78] sm:$0xff] %v503
    $region29: #{forward.2} parent=1 // pred_fallthru
      _
    // Predicated region
    $region30: #{forward.2} parent=1 // pred_check
      _
    $region31: #{forward.2} parent=1 // pred_check_branch
      %521 = sbr.rel (0) target = $region33
    $region32: #{forward.2} parent=1 // pred_region
      _
    $region33: #{forward.2} parent=1 // pred_fallthru
      _
    // Predicated region
    $region34: #{forward.2} parent=1 // pred_check
      _
    $region35: #{forward.2} parent=1 // pred_check_branch
      %523 = sbr.rel (0) target = $region37
    $region36: #{forward.2} parent=1 // pred_region
      _
    $region37: #{forward.2} parent=1 // pred_fallthru
      _
    %524 = vsyncpa [#allocation3], 1

// kernel: forward.3
$region0: #{forward.3}
  #allocation0 [shape = 'u32[]', space=smem, size = 0x4, offset = 0x4, fixed_abs, tag = 'smem constant byte address 0x4 - core index']
  #allocation1 [shape = 'u32[72,128]{1,0:T(1,128)}', space=vmem, size = 0x9000, scoped, tag = 'internal scratch']
  #allocation2 [shape = 'f32[128,128]{1,0:T(8,128)}', space=vmem, size = 0x10000, scoped, tag = 'scratch operand']
  #allocation3 [shape = 'f32[1]{0:T(128)S(6)}', space=smem, size = 0x200, scoped, tag = 'scoped memory for forward.3']
  %s0 = inlined_call_operand.vmem [shape: f32[4], index: 0, kind: input, shape index: {}]
  %s1 = inlined_call_operand.<no memory space> [shape: f32[1], index: 1, kind: input, shape index: {}]
  %s2 = inlined_call_operand.vmem [shape: bf16[4,128,128], index: 2, kind: input, shape index: {}]
  %s3 = inlined_call_operand.vmem [shape: f32[128,128], index: 3, kind: input, shape index: {}]
  %s4 = inlined_call_operand.vmem [shape: f32[1,128], index: 4, kind: input, shape index: {}]
  %s5 = inlined_call_operand.vmem [shape: f32[128,128], index: 5, kind: output, shape index: {}]
  %s6 = sld [smem:[#allocation0]]
  $region42: #{forward.3} parent=0
    _
  %s8 = ssub.s32 1, %s6
  %s9 = scalar_select 0, %s8, %s6
  %10 = sst [smem:[#allocation3]] %s1
  $region1: #{forward.3} parent=0
    #allocation4 [shape = 'u8[512]{0}', space=smem, size = 0x200, scoped, tag = 'input window, operand 0, single buffered']
    #allocation5 [shape = 's32[1]{0}', space=sflag, size = 0x4, scoped, tag = 'scoped memory for forward.3']
    %11 = vsyncpa [#allocation5], 0
    // Predicated region
    $region2: #{forward.3} parent=1 // pred_check
      _
    $region3: #{forward.3} parent=1 // pred_check_branch
      %13 = sbr.rel (0) target = $region5
    $region4: #{forward.3} parent=1 // pred_region
      %15 = vsyncadd [#allocation5], 0
      %s17 = sshll.u32 %s0, 4
      %s18 = int_to_ptr.vmem [resolvable:$true] %s17
      %20 = dma.vmem_to_smem %s18, 16, [#allocation4], [#allocation5]
    $region5: #{forward.3} parent=1 // pred_fallthru
      _
    // Predicated region
    $region6: #{forward.3} parent=1 // pred_check
      _
    $region7: #{forward.3} parent=1 // pred_check_branch
      %22 = sbr.rel (0) target = $region9
    $region8: #{forward.3} parent=1 // pred_region
      _
    $region9: #{forward.3} parent=1 // pred_fallthru
      _
    // Predicated region
    $region10: #{forward.3} parent=1 // pred_check
      _
    $region11: #{forward.3} parent=1 // pred_check_branch
      %24 = sbr.rel (0) target = $region13
    $region12: #{forward.3} parent=1 // pred_region
      _
    $region13: #{forward.3} parent=1 // pred_fallthru
      _
    // Predicated region
    $region14: #{forward.3} parent=1 // pred_check
      _
    $region15: #{forward.3} parent=1 // pred_check_branch
      %26 = sbr.rel (0) target = $region17
    $region16: #{forward.3} parent=1 // pred_region
      _
    $region17: #{forward.3} parent=1 // pred_fallthru
      _
    // Predicated region
    $region18: #{forward.3} parent=1 // pred_check
      _
    $region19: #{forward.3} parent=1 // pred_check_branch
      %28 = sbr.rel (0) target = $region21
    $region20: #{forward.3} parent=1 // pred_region
      _
    $region21: #{forward.3} parent=1 // pred_fallthru
      _
    // Predicated region
    $region22: #{forward.3} parent=1 // pred_check
      _
    $region23: #{forward.3} parent=1 // pred_check_branch
      %30 = sbr.rel (0) target = $region25
    $region24: #{forward.3} parent=1 // pred_region
      %32 = dma.done [#allocation5], 16
    $region25: #{forward.3} parent=1 // pred_fallthru
      _
    %33 = sfence
    %p34 = scmp.eq.s32.totalorder 0, 0
    // Predicated region
    $region26: #{forward.3} parent=1 // pred_check
      %p35 = pneg %p34
    $region27: #{forward.3} parent=1 // pred_check_branch
      %37 = sbr.rel (%p35) target = $region29
    $region28: #{forward.3} parent=1 // pred_region
      %38 = vst [vmem:[#allocation2] sm:$0xff] 0.0
      %39 = vst [vmem:[#allocation2 + $0x8] sm:$0xff] 0.0
      %40 = vst [vmem:[#allocation2 + $0x10] sm:$0xff] 0.0
      %41 = vst [vmem:[#allocation2 + $0x18] sm:$0xff] 0.0
      %42 = vst [vmem:[#allocation2 + $0x20] sm:$0xff] 0.0
      %43 = vst [vmem:[#allocation2 + $0x28] sm:$0xff] 0.0
      %44 = vst [vmem:[#allocation2 + $0x30] sm:$0xff] 0.0
      %45 = vst [vmem:[#allocation2 + $0x38] sm:$0xff] 0.0
      %46 = vst [vmem:[#allocation2 + $0x40] sm:$0xff] 0.0
      %47 = vst [vmem:[#allocation2 + $0x48] sm:$0xff] 0.0
      %48 = vst [vmem:[#allocation2 + $0x50] sm:$0xff] 0.0
      %49 = vst [vmem:[#allocation2 + $0x58] sm:$0xff] 0.0
      %50 = vst [vmem:[#allocation2 + $0x60] sm:$0xff] 0.0
      %51 = vst [vmem:[#allocation2 + $0x68] sm:$0xff] 0.0
      %52 = vst [vmem:[#allocation2 + $0x70] sm:$0xff] 0.0
      %53 = vst [vmem:[#allocation2 + $0x78] sm:$0xff] 0.0
    $region29: #{forward.3} parent=1 // pred_fallthru
      _
    %s54 = sld [smem:[#allocation4]]
    %v55 = vld [vmem:[%s2] sm:$0xf]
    %v56 = vld [vmem:[%s2 + $0x4] sm:$0xf]
    %v57 = vld [vmem:[%s2 + $0x8] sm:$0xf]
    %v58 = vld [vmem:[%s2 + $0xc] sm:$0xf]
    %v59 = vld [vmem:[%s2 + $0x10] sm:$0xf]
    %v60 = vld [vmem:[%s2 + $0x14] sm:$0xf]
    %v61 = vld [vmem:[%s2 + $0x18] sm:$0xf]
    %v62 = vld [vmem:[%s2 + $0x1c] sm:$0xf]
    %v63 = vld [vmem:[%s2 + $0x20] sm:$0xf]
    %v64 = vld [vmem:[%s2 + $0x24] sm:$0xf]
    %v65 = vld [vmem:[%s2 + $0x28] sm:$0xf]
    %v66 = vld [vmem:[%s2 + $0x2c] sm:$0xf]
    %v67 = vld [vmem:[%s2 + $0x30] sm:$0xf]
    %v68 = vld [vmem:[%s2 + $0x34] sm:$0xf]
    %v69 = vld [vmem:[%s2 + $0x38] sm:$0xf]
    %v70 = vld [vmem:[%s2 + $0x3c] sm:$0xf]
    %v71 = vunpack.c.l.bf16 %v55
    %v72 = vunpack.c.l.bf16 %v56
    %v73 = vunpack.c.l.bf16 %v57
    %v74 = vunpack.c.l.bf16 %v58
    %v75 = vunpack.c.l.bf16 %v59
    %v76 = vunpack.c.l.bf16 %v60
    %v77 = vunpack.c.l.bf16 %v61
    %v78 = vunpack.c.l.bf16 %v62
    %v79 = vunpack.c.l.bf16 %v63
    %v80 = vunpack.c.l.bf16 %v64
    %v81 = vunpack.c.l.bf16 %v65
    %v82 = vunpack.c.l.bf16 %v66
    %v83 = vunpack.c.l.bf16 %v67
    %v84 = vunpack.c.l.bf16 %v68
    %v85 = vunpack.c.l.bf16 %v69
    %v86 = vunpack.c.l.bf16 %v70
    %v87 = vstv %s54
    %v88 = vmul.f32 %v87, %v71
    %v89 = vmul.f32 %v87, %v72
    %v90 = vmul.f32 %v87, %v73
    %v91 = vmul.f32 %v87, %v74
    %v92 = vmul.f32 %v87, %v75
    %v93 = vmul.f32 %v87, %v76
    %v94 = vmul.f32 %v87, %v77
    %v95 = vmul.f32 %v87, %v78
    %v96 = vmul.f32 %v87, %v79
    %v97 = vmul.f32 %v87, %v80
    %v98 = vmul.f32 %v87, %v81
    %v99 = vmul.f32 %v87, %v82
    %v100 = vmul.f32 %v87, %v83
    %v101 = vmul.f32 %v87, %v84
    %v102 = vmul.f32 %v87, %v85
    %v103 = vmul.f32 %v87, %v86
    %s104 = sld [smem:[#allocation4 + $0x1]]
    %s105 = scalar_lea.vmem %s2, 64
    %v106 = vld [vmem:[%s105] sm:$0xf]
    %v107 = vld [vmem:[%s105 + $0x4] sm:$0xf]
    %v108 = vld [vmem:[%s105 + $0x8] sm:$0xf]
    %v109 = vld [vmem:[%s105 + $0xc] sm:$0xf]
    %v110 = vld [vmem:[%s105 + $0x10] sm:$0xf]
    %v111 = vld [vmem:[%s105 + $0x14] sm:$0xf]
    %v112 = vld [vmem:[%s105 + $0x18] sm:$0xf]
    %v113 = vld [vmem:[%s105 + $0x1c] sm:$0xf]
    %v114 = vld [vmem:[%s105 + $0x20] sm:$0xf]
    %v115 = vld [vmem:[%s105 + $0x24] sm:$0xf]
    %v116 = vld [vmem:[%s105 + $0x28] sm:$0xf]
    %v117 = vld [vmem:[%s105 + $0x2c] sm:$0xf]
    %v118 = vld [vmem:[%s105 + $0x30] sm:$0xf]
    %v119 = vld [vmem:[%s105 + $0x34] sm:$0xf]
    %v120 = vld [vmem:[%s105 + $0x38] sm:$0xf]
    %v121 = vld [vmem:[%s105 + $0x3c] sm:$0xf]
    %v122 = vunpack.c.l.bf16 %v106
    %v123 = vunpack.c.l.bf16 %v107
    %v124 = vunpack.c.l.bf16 %v108
    %v125 = vunpack.c.l.bf16 %v109
    %v126 = vunpack.c.l.bf16 %v110
    %v127 = vunpack.c.l.bf16 %v111
    %v128 = vunpack.c.l.bf16 %v112
    %v129 = vunpack.c.l.bf16 %v113
    %v130 = vunpack.c.l.bf16 %v114
    %v131 = vunpack.c.l.bf16 %v115
    %v132 = vunpack.c.l.bf16 %v116
    %v133 = vunpack.c.l.bf16 %v117
    %v134 = vunpack.c.l.bf16 %v118
    %v135 = vunpack.c.l.bf16 %v119
    %v136 = vunpack.c.l.bf16 %v120
    %v137 = vunpack.c.l.bf16 %v121
    %v138 = vstv %s104
    %v139 = vmul.f32 %v138, %v122
    %v140 = vmul.f32 %v138, %v123
    %v141 = vmul.f32 %v138, %v124
    %v142 = vmul.f32 %v138, %v125
    %v143 = vmul.f32 %v138, %v126
    %v144 = vmul.f32 %v138, %v127
    %v145 = vmul.f32 %v138, %v128
    %v146 = vmul.f32 %v138, %v129
    %v147 = vmul.f32 %v138, %v130
    %v148 = vmul.f32 %v138, %v131
    %v149 = vmul.f32 %v138, %v132
    %v150 = vmul.f32 %v138, %v133
    %v151 = vmul.f32 %v138, %v134
    %v152 = vmul.f32 %v138, %v135
    %v153 = vmul.f32 %v138, %v136
    %v154 = vmul.f32 %v138, %v137
    %v155 = vadd.f32 %v88, %v139
    %v156 = vadd.f32 %v89, %v140
    %v157 = vadd.f32 %v90, %v141
    %v158 = vadd.f32 %v91, %v142
    %v159 = vadd.f32 %v92, %v143
    %v160 = vadd.f32 %v93, %v144
    %v161 = vadd.f32 %v94, %v145
    %v162 = vadd.f32 %v95, %v146
    %v163 = vadd.f32 %v96, %v147
    %v164 = vadd.f32 %v97, %v148
    %v165 = vadd.f32 %v98, %v149
    %v166 = vadd.f32 %v99, %v150
    %v167 = vadd.f32 %v100, %v151
    %v168 = vadd.f32 %v101, %v152
    %v169 = vadd.f32 %v102, %v153
    %v170 = vadd.f32 %v103, %v154
    %s171 = sld [smem:[#allocation4 + $0x2]]
    %s172 = scalar_lea.vmem %s2, 128
    %v173 = vld [vmem:[%s172] sm:$0xf]
    %v174 = vld [vmem:[%s172 + $0x4] sm:$0xf]
    %v175 = vld [vmem:[%s172 + $0x8] sm:$0xf]
    %v176 = vld [vmem:[%s172 + $0xc] sm:$0xf]
    %v177 = vld [vmem:[%s172 + $0x10] sm:$0xf]
    %v178 = vld [vmem:[%s172 + $0x14] sm:$0xf]
    %v179 = vld [vmem:[%s172 + $0x18] sm:$0xf]
    %v180 = vld [vmem:[%s172 + $0x1c] sm:$0xf]
    %v181 = vld [vmem:[%s172 + $0x20] sm:$0xf]
    %v182 = vld [vmem:[%s172 + $0x24] sm:$0xf]
    %v183 = vld [vmem:[%s172 + $0x28] sm:$0xf]
    %v184 = vld [vmem:[%s172 + $0x2c] sm:$0xf]
    %v185 = vld [vmem:[%s172 + $0x30] sm:$0xf]
    %v186 = vld [vmem:[%s172 + $0x34] sm:$0xf]
    %v187 = vld [vmem:[%s172 + $0x38] sm:$0xf]
    %v188 = vld [vmem:[%s172 + $0x3c] sm:$0xf]
    %v189 = vunpack.c.l.bf16 %v173
    %v190 = vunpack.c.l.bf16 %v174
    %v191 = vunpack.c.l.bf16 %v175
    %v192 = vunpack.c.l.bf16 %v176
    %v193 = vunpack.c.l.bf16 %v177
    %v194 = vunpack.c.l.bf16 %v178
    %v195 = vunpack.c.l.bf16 %v179
    %v196 = vunpack.c.l.bf16 %v180
    %v197 = vunpack.c.l.bf16 %v181
    %v198 = vunpack.c.l.bf16 %v182
    %v199 = vunpack.c.l.bf16 %v183
    %v200 = vunpack.c.l.bf16 %v184
    %v201 = vunpack.c.l.bf16 %v185
    %v202 = vunpack.c.l.bf16 %v186
    %v203 = vunpack.c.l.bf16 %v187
    %v204 = vunpack.c.l.bf16 %v188
    %v205 = vstv %s171
    %v206 = vmul.f32 %v205, %v189
    %v207 = vmul.f32 %v205, %v190
    %v208 = vmul.f32 %v205, %v191
    %v209 = vmul.f32 %v205, %v192
    %v210 = vmul.f32 %v205, %v193
    %v211 = vmul.f32 %v205, %v194
    %v212 = vmul.f32 %v205, %v195
    %v213 = vmul.f32 %v205, %v196
    %v214 = vmul.f32 %v205, %v197
    %v215 = vmul.f32 %v205, %v198
    %v216 = vmul.f32 %v205, %v199
    %v217 = vmul.f32 %v205, %v200
    %v218 = vmul.f32 %v205, %v201
    %v219 = vmul.f32 %v205, %v202
    %v220 = vmul.f32 %v205, %v203
    %v221 = vmul.f32 %v205, %v204
    %s222 = sld [smem:[#allocation4 + $0x3]]
    %s223 = scalar_lea.vmem %s2, 192
    %v224 = vld [vmem:[%s223] sm:$0xf]
    %v225 = vld [vmem:[%s223 + $0x4] sm:$0xf]
    %v226 = vld [vmem:[%s223 + $0x8] sm:$0xf]
    %v227 = vld [vmem:[%s223 + $0xc] sm:$0xf]
    %v228 = vld [vmem:[%s223 + $0x10] sm:$0xf]
    %v229 = vld [vmem:[%s223 + $0x14] sm:$0xf]
    %v230 = vld [vmem:[%s223 + $0x18] sm:$0xf]
    %v231 = vld [vmem:[%s223 + $0x1c] sm:$0xf]
    %v232 = vld [vmem:[%s223 + $0x20] sm:$0xf]
    %v233 = vld [vmem:[%s223 + $0x24] sm:$0xf]
    %v234 = vld [vmem:[%s223 + $0x28] sm:$0xf]
    %v235 = vld [vmem:[%s223 + $0x2c] sm:$0xf]
    %v236 = vld [vmem:[%s223 + $0x30] sm:$0xf]
    %v237 = vld [vmem:[%s223 + $0x34] sm:$0xf]
    %v238 = vld [vmem:[%s223 + $0x38] sm:$0xf]
    %v239 = vld [vmem:[%s223 + $0x3c] sm:$0xf]
    %v240 = vunpack.c.l.bf16 %v224
    %v241 = vunpack.c.l.bf16 %v225
    %v242 = vunpack.c.l.bf16 %v226
    %v243 = vunpack.c.l.bf16 %v227
    %v244 = vunpack.c.l.bf16 %v228
    %v245 = vunpack.c.l.bf16 %v229
    %v246 = vunpack.c.l.bf16 %v230
    %v247 = vunpack.c.l.bf16 %v231
    %v248 = vunpack.c.l.bf16 %v232
    %v249 = vunpack.c.l.bf16 %v233
    %v250 = vunpack.c.l.bf16 %v234
    %v251 = vunpack.c.l.bf16 %v235
    %v252 = vunpack.c.l.bf16 %v236
    %v253 = vunpack.c.l.bf16 %v237
    %v254 = vunpack.c.l.bf16 %v238
    %v255 = vunpack.c.l.bf16 %v239
    %v256 = vstv %s222
    %v257 = vmul.f32 %v256, %v240
    %v258 = vmul.f32 %v256, %v241
    %v259 = vmul.f32 %v256, %v242
    %v260 = vmul.f32 %v256, %v243
    %v261 = vmul.f32 %v256, %v244
    %v262 = vmul.f32 %v256, %v245
    %v263 = vmul.f32 %v256, %v246
    %v264 = vmul.f32 %v256, %v247
    %v265 = vmul.f32 %v256, %v248
    %v266 = vmul.f32 %v256, %v249
    %v267 = vmul.f32 %v256, %v250
    %v268 = vmul.f32 %v256, %v251
    %v269 = vmul.f32 %v256, %v252
    %v270 = vmul.f32 %v256, %v253
    %v271 = vmul.f32 %v256, %v254
    %v272 = vmul.f32 %v256, %v255
    %v273 = vadd.f32 %v206, %v257
    %v274 = vadd.f32 %v207, %v258
    %v275 = vadd.f32 %v208, %v259
    %v276 = vadd.f32 %v209, %v260
    %v277 = vadd.f32 %v210, %v261
    %v278 = vadd.f32 %v211, %v262
    %v279 = vadd.f32 %v212, %v263
    %v280 = vadd.f32 %v213, %v264
    %v281 = vadd.f32 %v214, %v265
    %v282 = vadd.f32 %v215, %v266
    %v283 = vadd.f32 %v216, %v267
    %v284 = vadd.f32 %v217, %v268
    %v285 = vadd.f32 %v218, %v269
    %v286 = vadd.f32 %v219, %v270
    %v287 = vadd.f32 %v220, %v271
    %v288 = vadd.f32 %v221, %v272
    %v289 = vadd.f32 %v155, %v273
    %v290 = vadd.f32 %v156, %v274
    %v291 = vadd.f32 %v157, %v275
    %v292 = vadd.f32 %v158, %v276
    %v293 = vadd.f32 %v159, %v277
    %v294 = vadd.f32 %v160, %v278
    %v295 = vadd.f32 %v161, %v279
    %v296 = vadd.f32 %v162, %v280
    %v297 = vadd.f32 %v163, %v281
    %v298 = vadd.f32 %v164, %v282
    %v299 = vadd.f32 %v165, %v283
    %v300 = vadd.f32 %v166, %v284
    %v301 = vadd.f32 %v167, %v285
    %v302 = vadd.f32 %v168, %v286
    %v303 = vadd.f32 %v169, %v287
    %v304 = vadd.f32 %v170, %v288
    %s305 = sld [smem:[#allocation3]]
    %v306 = vstv %s305
    %v307 = vadd.f32 %v289, %v306
    %v308 = vadd.f32 %v290, %v306
    %v309 = vadd.f32 %v291, %v306
    %v310 = vadd.f32 %v292, %v306
    %v311 = vadd.f32 %v293, %v306
    %v312 = vadd.f32 %v294, %v306
    %v313 = vadd.f32 %v295, %v306
    %v314 = vadd.f32 %v296, %v306
    %v315 = vadd.f32 %v297, %v306
    %v316 = vadd.f32 %v298, %v306
    %v317 = vadd.f32 %v299, %v306
    %v318 = vadd.f32 %v300, %v306
    %v319 = vadd.f32 %v301, %v306
    %v320 = vadd.f32 %v302, %v306
    %v321 = vadd.f32 %v303, %v306
    %v322 = vadd.f32 %v304, %v306
    %s323 = smul.u32 0, 128
    %s324 = scalar_lea.vmem %s3, %s323
    %v325 = vld [vmem:[%s324] sm:$0xff]
    %v326 = vld [vmem:[%s324 + $0x8] sm:$0xff]
    %v327 = vld [vmem:[%s324 + $0x10] sm:$0xff]
    %v328 = vld [vmem:[%s324 + $0x18] sm:$0xff]
    %v329 = vld [vmem:[%s324 + $0x20] sm:$0xff]
    %v330 = vld [vmem:[%s324 + $0x28] sm:$0xff]
    %v331 = vld [vmem:[%s324 + $0x30] sm:$0xff]
    %v332 = vld [vmem:[%s324 + $0x38] sm:$0xff]
    %v333 = vld [vmem:[%s324 + $0x40] sm:$0xff]
    %v334 = vld [vmem:[%s324 + $0x48] sm:$0xff]
    %v335 = vld [vmem:[%s324 + $0x50] sm:$0xff]
    %v336 = vld [vmem:[%s324 + $0x58] sm:$0xff]
    %v337 = vld [vmem:[%s324 + $0x60] sm:$0xff]
    %v338 = vld [vmem:[%s324 + $0x68] sm:$0xff]
    %v339 = vld [vmem:[%s324 + $0x70] sm:$0xff]
    %v340 = vld [vmem:[%s324 + $0x78] sm:$0xff]
    %v341 = vld [vmem:[#allocation2] sm:$0xff]
    %v342 = vld [vmem:[#allocation2 + $0x8] sm:$0xff]
    %v343 = vld [vmem:[#allocation2 + $0x10] sm:$0xff]
    %v344 = vld [vmem:[#allocation2 + $0x18] sm:$0xff]
    %v345 = vld [vmem:[#allocation2 + $0x20] sm:$0xff]
    %v346 = vld [vmem:[#allocation2 + $0x28] sm:$0xff]
    %v347 = vld [vmem:[#allocation2 + $0x30] sm:$0xff]
    %v348 = vld [vmem:[#allocation2 + $0x38] sm:$0xff]
    %v349 = vld [vmem:[#allocation2 + $0x40] sm:$0xff]
    %v350 = vld [vmem:[#allocation2 + $0x48] sm:$0xff]
    %v351 = vld [vmem:[#allocation2 + $0x50] sm:$0xff]
    %v352 = vld [vmem:[#allocation2 + $0x58] sm:$0xff]
    %v353 = vld [vmem:[#allocation2 + $0x60] sm:$0xff]
    %v354 = vld [vmem:[#allocation2 + $0x68] sm:$0xff]
    %v355 = vld [vmem:[#allocation2 + $0x70] sm:$0xff]
    %v356 = vld [vmem:[#allocation2 + $0x78] sm:$0xff]
    %357 = vmatpush.msra.mxu0 %v340
    %358 = vmatpush.msra.mxu0 %v339
    %359 = vmatpush.msra.mxu0 %v338
    %360 = vmatpush.msra.mxu0 %v337
    %361 = vmatpush.msra.mxu0 %v336
    %362 = vmatpush.msra.mxu0 %v335
    %363 = vmatpush.msra.mxu0 %v334
    %364 = vmatpush.msra.mxu0 %v333
    %365 = vmatpush.msra.mxu0 %v332
    %366 = vmatpush.msra.mxu0 %v331
    %367 = vmatpush.msra.mxu0 %v330
    %368 = vmatpush.msra.mxu0 %v329
    %369 = vmatpush.msra.mxu0 %v328
    %370 = vmatpush.msra.mxu0 %v327
    %371 = vmatpush.msra.mxu0 %v326
    %372 = vmatpush.msra.mxu0 %v325
    %373 = vmatmul.f32.gmra.mxu0 %v307
    %v374 = vpop.f32.mrf.mxu0
    %v375 = vadd.f32 0.0, %v374
    %376 = vmatmul.f32.gmra.mxu0 %v308
    %v377 = vpop.f32.mrf.mxu0
    %v378 = vadd.f32 0.0, %v377
    %379 = vmatmul.f32.gmra.mxu0 %v309
    %v380 = vpop.f32.mrf.mxu0
    %v381 = vadd.f32 0.0, %v380
    %382 = vmatmul.f32.gmra.mxu0 %v310
    %v383 = vpop.f32.mrf.mxu0
    %v384 = vadd.f32 0.0, %v383
    %385 = vmatmul.f32.gmra.mxu0 %v311
    %v386 = vpop.f32.mrf.mxu0
    %v387 = vadd.f32 0.0, %v386
    %388 = vmatmul.f32.gmra.mxu0 %v312
    %v389 = vpop.f32.mrf.mxu0
    %v390 = vadd.f32 0.0, %v389
    %391 = vmatmul.f32.gmra.mxu0 %v313
    %v392 = vpop.f32.mrf.mxu0
    %v393 = vadd.f32 0.0, %v392
    %394 = vmatmul.f32.gmra.mxu0 %v314
    %v395 = vpop.f32.mrf.mxu0
    %v396 = vadd.f32 0.0, %v395
    %397 = vmatmul.f32.gmra.mxu0 %v315
    %v398 = vpop.f32.mrf.mxu0
    %v399 = vadd.f32 0.0, %v398
    %400 = vmatmul.f32.gmra.mxu0 %v316
    %v401 = vpop.f32.mrf.mxu0
    %v402 = vadd.f32 0.0, %v401
    %403 = vmatmul.f32.gmra.mxu0 %v317
    %v404 = vpop.f32.mrf.mxu0
    %v405 = vadd.f32 0.0, %v404
    %406 = vmatmul.f32.gmra.mxu0 %v318
    %v407 = vpop.f32.mrf.mxu0
    %v408 = vadd.f32 0.0, %v407
    %409 = vmatmul.f32.gmra.mxu0 %v319
    %v410 = vpop.f32.mrf.mxu0
    %v411 = vadd.f32 0.0, %v410
    %412 = vmatmul.f32.gmra.mxu0 %v320
    %v413 = vpop.f32.mrf.mxu0
    %v414 = vadd.f32 0.0, %v413
    %415 = vmatmul.f32.gmra.mxu0 %v321
    %v416 = vpop.f32.mrf.mxu0
    %v417 = vadd.f32 0.0, %v416
    %418 = vmatmul.f32.gmra.mxu0 %v322
    %v419 = vpop.f32.mrf.mxu0
    %v420 = vadd.f32 0.0, %v419
    %421 = vdwg.mxu0
    %v422 = vadd.f32 %v341, %v375
    %v423 = vadd.f32 %v342, %v378
    %v424 = vadd.f32 %v343, %v381
    %v425 = vadd.f32 %v344, %v384
    %v426 = vadd.f32 %v345, %v387
    %v427 = vadd.f32 %v346, %v390
    %v428 = vadd.f32 %v347, %v393
    %v429 = vadd.f32 %v348, %v396
    %v430 = vadd.f32 %v349, %v399
    %v431 = vadd.f32 %v350, %v402
    %v432 = vadd.f32 %v351, %v405
    %v433 = vadd.f32 %v352, %v408
    %v434 = vadd.f32 %v353, %v411
    %v435 = vadd.f32 %v354, %v414
    %v436 = vadd.f32 %v355, %v417
    %v437 = vadd.f32 %v356, %v420
    %438 = vst [vmem:[#allocation2] sm:$0xff] %v422
    %439 = vst [vmem:[#allocation2 + $0x8] sm:$0xff] %v423
    %440 = vst [vmem:[#allocation2 + $0x10] sm:$0xff] %v424
    %441 = vst [vmem:[#allocation2 + $0x18] sm:$0xff] %v425
    %442 = vst [vmem:[#allocation2 + $0x20] sm:$0xff] %v426
    %443 = vst [vmem:[#allocation2 + $0x28] sm:$0xff] %v427
    %444 = vst [vmem:[#allocation2 + $0x30] sm:$0xff] %v428
    %445 = vst [vmem:[#allocation2 + $0x38] sm:$0xff] %v429
    %446 = vst [vmem:[#allocation2 + $0x40] sm:$0xff] %v430
    %447 = vst [vmem:[#allocation2 + $0x48] sm:$0xff] %v431
    %448 = vst [vmem:[#allocation2 + $0x50] sm:$0xff] %v432
    %449 = vst [vmem:[#allocation2 + $0x58] sm:$0xff] %v433
    %450 = vst [vmem:[#allocation2 + $0x60] sm:$0xff] %v434
    %451 = vst [vmem:[#allocation2 + $0x68] sm:$0xff] %v435
    %452 = vst [vmem:[#allocation2 + $0x70] sm:$0xff] %v436
    %453 = vst [vmem:[#allocation2 + $0x78] sm:$0xff] %v437
    // Predicated region
    $region30: #{forward.3} parent=1 // pred_check
      %p454 = pneg %p34
    $region31: #{forward.3} parent=1 // pred_check_branch
      %456 = sbr.rel (%p454) target = $region33
    $region32: #{forward.3} parent=1 // pred_region
      %v457 = vld [vmem:[#allocation2] sm:$0xff]
      %v458 = vld [vmem:[#allocation2 + $0x8] sm:$0xff]
      %v459 = vld [vmem:[#allocation2 + $0x10] sm:$0xff]
      %v460 = vld [vmem:[#allocation2 + $0x18] sm:$0xff]
      %v461 = vld [vmem:[#allocation2 + $0x20] sm:$0xff]
      %v462 = vld [vmem:[#allocation2 + $0x28] sm:$0xff]
      %v463 = vld [vmem:[#allocation2 + $0x30] sm:$0xff]
      %v464 = vld [vmem:[#allocation2 + $0x38] sm:$0xff]
      %v465 = vld [vmem:[#allocation2 + $0x40] sm:$0xff]
      %v466 = vld [vmem:[#allocation2 + $0x48] sm:$0xff]
      %v467 = vld [vmem:[#allocation2 + $0x50] sm:$0xff]
      %v468 = vld [vmem:[#allocation2 + $0x58] sm:$0xff]
      %v469 = vld [vmem:[#allocation2 + $0x60] sm:$0xff]
      %v470 = vld [vmem:[#allocation2 + $0x68] sm:$0xff]
      %v471 = vld [vmem:[#allocation2 + $0x70] sm:$0xff]
      %v472 = vld [vmem:[#allocation2 + $0x78] sm:$0xff]
      %v473 = vld [vmem:[%s4] sm:$0x1]
      %v475 = vperm.slane %v473, 0
      %v477 = vadd.f32 %v457, %v475
      %v478 = vadd.f32 %v458, %v475
      %v479 = vadd.f32 %v459, %v475
      %v480 = vadd.f32 %v460, %v475
      %v481 = vadd.f32 %v461, %v475
      %v482 = vadd.f32 %v462, %v475
      %v483 = vadd.f32 %v463, %v475
      %v484 = vadd.f32 %v464, %v475
      %v485 = vadd.f32 %v465, %v475
      %v486 = vadd.f32 %v466, %v475
      %v487 = vadd.f32 %v467, %v475
      %v488 = vadd.f32 %v468, %v475
      %v489 = vadd.f32 %v469, %v475
      %v490 = vadd.f32 %v470, %v475
      %v491 = vadd.f32 %v471, %v475
      %v492 = vadd.f32 %v472, %v475
      %493 = vst [vmem:[%s5] sm:$0xff] %v477
      %494 = vst [vmem:[%s5 + $0x8] sm:$0xff] %v478
      %495 = vst [vmem:[%s5 + $0x10] sm:$0xff] %v479
      %496 = vst [vmem:[%s5 + $0x18] sm:$0xff] %v480
      %497 = vst [vmem:[%s5 + $0x20] sm:$0xff] %v481
      %498 = vst [vmem:[%s5 + $0x28] sm:$0xff] %v482
      %499 = vst [vmem:[%s5 + $0x30] sm:$0xff] %v483
      %500 = vst [vmem:[%s5 + $0x38] sm:$0xff] %v484
      %501 = vst [vmem:[%s5 + $0x40] sm:$0xff] %v485
      %502 = vst [vmem:[%s5 + $0x48] sm:$0xff] %v486
      %503 = vst [vmem:[%s5 + $0x50] sm:$0xff] %v487
      %504 = vst [vmem:[%s5 + $0x58] sm:$0xff] %v488
      %505 = vst [vmem:[%s5 + $0x60] sm:$0xff] %v489
      %506 = vst [vmem:[%s5 + $0x68] sm:$0xff] %v490
      %507 = vst [vmem:[%s5 + $0x70] sm:$0xff] %v491
      %508 = vst [vmem:[%s5 + $0x78] sm:$0xff] %v492
    $region33: #{forward.3} parent=1 // pred_fallthru
      _
    // Predicated region
    $region34: #{forward.3} parent=1 // pred_check
      _
    $region35: #{forward.3} parent=1 // pred_check_branch
      %510 = sbr.rel (0) target = $region37
    $region36: #{forward.3} parent=1 // pred_region
      _
    $region37: #{forward.3} parent=1 // pred_fallthru
      _
    // Predicated region
    $region38: #{forward.3} parent=1 // pred_check
      _
    $region39: #{forward.3} parent=1 // pred_check_branch
      %512 = sbr.rel (0) target = $region41
    $region40: #{forward.3} parent=1 // pred_region
      _
    $region41: #{forward.3} parent=1 // pred_fallthru
      _
    %513 = vsyncpa [#allocation5], 1

</llo_original>
